<compile_context>
chip_gen: v7x
topology: tpu7x:2x2x1
jax: 0.10.0
libtpu: 0.0.40
codegen_flags: <defaults>
</compile_context>

<pallas_src>
import functools
import numpy as np
import jax
import jax.numpy as jnp
from jax.experimental import pallas as pl
from jax.experimental.pallas import tpu as pltpu


def aurc_ce_kernel(logits_ref, target_ref, ce_ref, m_ref, s_ref, t_ref, *,
                   num_classes, class_chunk):
    # logits_ref: (TN, TC) native dtype | target_ref: (TN, 1) i32 | ce_ref: (TN, 1) f32
    # m/s/t_ref: (TN, 1) f32 running max / sum-exp / target-logit accumulators.
    k = pl.program_id(1)

    @pl.when(k == 0)
    def _init():
        m_ref[...] = jnp.full(m_ref.shape, -jnp.inf, dtype=m_ref.dtype)
        s_ref[...] = jnp.zeros(s_ref.shape, dtype=s_ref.dtype)
        t_ref[...] = jnp.zeros(t_ref.shape, dtype=t_ref.dtype)

    x = logits_ref[...]                      # (TN, TC), native dtype (f32 or bf16)
    tgt = target_ref[...]                    # (TN, 1) int32

    # Global class ids of this chunk via a (1, TC) iota (no (TN, TC) integer temp).
    col = jax.lax.broadcasted_iota(jnp.int32, (1, class_chunk), 1) + k * class_chunk

    # Mask the ragged tail of the last class chunk (static no-op when TC divides C).
    if num_classes % class_chunk != 0:
        x = jnp.where(col < num_classes, x, jnp.array(-jnp.inf, dtype=x.dtype))

    # Row max + one-hot target select in the input dtype (exact; bf16-native VPU on
    # v6e/v7x).  Precision-sensitive work (shift, exp, log, accumulate) runs in f32.
    m_old = m_ref[...]
    m_new = jnp.maximum(m_old, jnp.max(x, axis=-1, keepdims=True).astype(jnp.float32))
    onehot = col == tgt                                           # (TN, TC) via broadcast
    t_ref[...] += jnp.sum(jnp.where(onehot, x, jnp.zeros([], x.dtype)),
                          axis=-1, keepdims=True).astype(jnp.float32)

    # TODO(synk): on v7x the two row-sums could be offloaded to the idle MXU via
    # jnp.dot(vals, ones((TC, 1), f32)) if the VPU slot ever becomes the binder.
    ex = jnp.exp(x.astype(jnp.float32) - m_new)
    s_ref[...] = s_ref[...] * jnp.exp(m_old - m_new) + jnp.sum(ex, axis=-1, keepdims=True)
    m_ref[...] = m_new

    @pl.when(k == pl.num_programs(1) - 1)
    def _finalize():
        ce_ref[...] = m_ref[...] + jnp.log(s_ref[...]) - t_ref[...]


def _round_up(x, m):
    return ((x + m - 1) // m) * m


def _vmem_budget_bytes():
    """~Half this generation's per-core VMEM (v7x: 64 MiB/TC vs 128 MiB on v5e/v6e)."""
    try:
        cap = int(pltpu.get_tpu_info().vmem_capacity_bytes)
    except Exception:
        cap = 64 << 20            # conservative (v7x-sized) fallback
    return cap // 2


def _vmem_need_bytes(tn, tc, itemsize):
    logits_blocks = 2 * tn * tc * itemsize    # double-buffered input tiles
    f32_temps = 3 * tn * tc * 4               # f32 upcast / exp / one-hot select temps
    narrow = 8 * tn * 512                     # (tn,1) buffers pad lanes to 128 (tgt/ce/scratch)
    return logits_blocks + f32_temps + narrow + (1 << 20)


def _select_tiles(N, C, itemsize, tile_bytes, vmem_budget):
    # Class chunk: keep the full row (TC = C) unless that forces the row tile below
    # ~256 rows; otherwise chunk C in lane-aligned multiples of 128 and accumulate
    # online over the "arbitrary" grid axis.
    if C <= 128 or 256 * C * itemsize <= tile_bytes:
        tc = C
    else:
        tc = max(128, tile_bytes // (256 * itemsize) // 128 * 128)
        tc = min(tc, C // 128 * 128)

    # Row tile: fill the per-tile byte target, then clamp so double-buffered blocks
    # plus in-kernel f32 intermediates stay inside the scoped-VMEM budget.
    per_row_vmem = 2 * tc * itemsize + 3 * tc * 4 + 8 * 512
    tn = max(8, tile_bytes // (tc * itemsize) // 8 * 8)
    tn = min(tn, max(8, (vmem_budget - (1 << 20)) // per_row_vmem // 8 * 8))
    tn = min(tn, _round_up(N, 8))

    # Prefer an even number of row tiles so the "parallel" axis splits evenly across
    # v7x's two TensorCores (harmless on single-TC v5e/v6e: ~0.35 us per extra step).
    g = -(-N // tn)
    if g > 1 and g % 2 == 1:
        cand, floor_ = tn - 8, max(8, tn // 2 // 8 * 8)
        while cand >= floor_:
            if (-(-N // cand)) % 2 == 0:
                tn = cand
                break
            cand -= 8
    return tn, tc


def alpha_aurc_loss(logits, target, *, tile_bytes=4 << 20, row_tile=None, col_tile=None):
    """logits: (N, C) float, target: (N,) int in [0, C) -> scalar float32."""
    N, C = logits.shape
    itemsize = jnp.dtype(logits.dtype).itemsize

    vmem_budget = _vmem_budget_bytes()
    tn, tc = _select_tiles(N, C, itemsize, tile_bytes, vmem_budget)
    if row_tile is not None:      # test/debug overrides:
        tn = row_tile             #   row_tile % 8 == 0
    if col_tile is not None:      #   col_tile == C or col_tile % 128 == 0
        tc = col_tile

    grid = (pl.cdiv(N, tn), pl.cdiv(C, tc))   # no wrapper-side padding / extra HBM copies
    vmem_limit = max(32 << 20, _vmem_need_bytes(tn, tc, itemsize) + (8 << 20))
    vmem_limit = int(min(vmem_limit, 2 * vmem_budget - (4 << 20)))

    kernel = functools.partial(aurc_ce_kernel, num_classes=C, class_chunk=tc)
    ce = pl.pallas_call(
        kernel,
        out_shape=jax.ShapeDtypeStruct((N, 1), jnp.float32),
        grid_spec=pltpu.PrefetchScalarGridSpec(
            num_scalar_prefetch=0,
            grid=grid,
            in_specs=[
                pl.BlockSpec((tn, tc), lambda i, k: (i, k)),
                pl.BlockSpec((tn, 1), lambda i, k: (i, 0)),
            ],
            out_specs=pl.BlockSpec((tn, 1), lambda i, k: (i, 0)),
            scratch_shapes=[pltpu.VMEM((tn, 1), jnp.float32)] * 3,
        ),
        compiler_params=pltpu.CompilerParams(
            dimension_semantics=("parallel", "arbitrary"),
            vmem_limit_bytes=vmem_limit,
        ),
    )(logits, target.reshape(N, 1).astype(jnp.int32))

    # CrossEntropyLoss(reduction='mean') over the N real rows (ragged tail rows of the
    # last tile are clipped on writeback and never appear in the (N, 1) output).
    losses = jnp.mean(ce)

    # mean(alphas * losses) == losses * mean(alphas); mean(alphas) is a constant of the
    # static N, folded at trace time (would need a jnp computation under dynamic shapes).
    mean_alpha = float(-np.mean(np.log(1.0 - np.arange(N, dtype=np.float64) / N)))
    return losses * mean_alpha


def _reference(logits, target):
    # Pure-JAX mirror of the PyTorch module (including the no-op sort), for sanity checks.
    N = target.shape[0]
    msp = jnp.max(jax.nn.softmax(logits, axis=-1), axis=-1)
    idx = jnp.argsort(msp)                       # ascending (descending=False)
    li, ti = logits[idx], target[idx]
    lse = jax.scipy.special.logsumexp(li, axis=-1)
    ce = lse - jnp.take_along_axis(li, ti[:, None], axis=-1)[:, 0]
    losses = jnp.mean(ce)
    alphas = -jnp.log(1.0 - jnp.arange(N, dtype=jnp.float32) / N)
    return jnp.mean(alphas * losses)


if __name__ == "__main__":
    key = jax.random.PRNGKey(0)
    k1, k2 = jax.random.split(key)
    N, C = 24, 160
    logits = jax.random.normal(k1, (N, C), dtype=jnp.float32)
    target = jax.random.randint(k2, (N,), 0, C, dtype=jnp.int32)

    ref = _reference(logits, target)

    # auto-sized tiles: TN=24, TC=C -> grid (1, 1)
    out = jax.block_until_ready(alpha_aurc_loss(logits, target))
    # forced small tiles: grid (3, 2) -> online C-chunk accumulation + masked ragged
    # last class chunk (160 % 128 != 0)
    out_chunked = jax.block_until_ready(
        alpha_aurc_loss(logits, target, row_tile=8, col_tile=128))
    # ragged row boundary: grid (2, 1), last row tile half out-of-bounds (clipped write)
    out_ragged = jax.block_until_ready(alpha_aurc_loss(logits, target, row_tile=16))

    for o in (out, out_chunked, out_ragged):
        assert jnp.allclose(o, ref, atol=1e-5, rtol=1e-5), (o, ref)
    print("KERNEL_OK")
</pallas_src>

<mosaic_0001>
module attributes {stable_mosaic.version = 11 : i64} {
  func.func @aurc_ce_kernel(%arg0: i32, %arg1: i32, %arg2: memref<24x160xf32, #tpu.memory_space<vmem>>, %arg3: memref<24x1xi32, #tpu.memory_space<vmem>>, %arg4: memref<24x1xf32, #tpu.memory_space<vmem>>, %arg5: memref<24x1xf32, #tpu.memory_space<vmem>>, %arg6: memref<24x1xf32, #tpu.memory_space<vmem>>, %arg7: memref<24x1xf32, #tpu.memory_space<vmem>>) attributes {dimension_semantics = [#tpu.dimension_semantics<parallel>, #tpu.dimension_semantics<arbitrary>], iteration_bounds = array<i64: 1, 1>, scalar_prefetch = 0 : i64, scratch_operands = 3 : i64, tpu.core_type = #tpu.core_type<tc>, window_params = [{transform_indices = @transform_0, window_bounds = array<i64: 24, 160>}, {transform_indices = @transform_1, window_bounds = array<i64: 24, 1>}, {transform_indices = @transform_2, window_bounds = array<i64: 24, 1>}]} {
    %c0_i32 = arith.constant 0 : i32
    %0 = arith.cmpi eq, %arg1, %c0_i32 : i32
    %1 = arith.extui %0 : i1 to i32
    %c0_i32_0 = arith.constant 0 : i32
    %2 = arith.cmpi ne, %1, %c0_i32_0 : i32
    scf.if %2 {
      %cst_21 = arith.constant 0xFF800000 : f32
      %38 = vector.broadcast %cst_21 : f32 to vector<24x1xf32>
      %c0_22 = arith.constant 0 : index
      %c0_23 = arith.constant 0 : index
      %39 = vector.load %arg5[%c0_22, %c0_23] : memref<24x1xf32, #tpu.memory_space<vmem>>, vector<24x1xf32>
      tpu.vector_store %arg5[%c0_22, %c0_23], %38 {strides = array<i32>} : memref<24x1xf32, #tpu.memory_space<vmem>>, vector<24x1xf32>,
      %cst_24 = arith.constant 0.000000e+00 : f32
      %40 = vector.broadcast %cst_24 : f32 to vector<24x1xf32>
      %c0_25 = arith.constant 0 : index
      %c0_26 = arith.constant 0 : index
      %41 = vector.load %arg6[%c0_25, %c0_26] : memref<24x1xf32, #tpu.memory_space<vmem>>, vector<24x1xf32>
      tpu.vector_store %arg6[%c0_25, %c0_26], %40 {strides = array<i32>} : memref<24x1xf32, #tpu.memory_space<vmem>>, vector<24x1xf32>,
      %cst_27 = arith.constant 0.000000e+00 : f32
      %42 = vector.broadcast %cst_27 : f32 to vector<24x1xf32>
      %c0_28 = arith.constant 0 : index
      %c0_29 = arith.constant 0 : index
      %43 = vector.load %arg7[%c0_28, %c0_29] : memref<24x1xf32, #tpu.memory_space<vmem>>, vector<24x1xf32>
      tpu.vector_store %arg7[%c0_28, %c0_29], %42 {strides = array<i32>} : memref<24x1xf32, #tpu.memory_space<vmem>>, vector<24x1xf32>,
    } else {
    }
    %c0 = arith.constant 0 : index
    %c0_1 = arith.constant 0 : index
    %3 = vector.load %arg2[%c0, %c0_1] : memref<24x160xf32, #tpu.memory_space<vmem>>, vector<24x160xf32>
    %c0_2 = arith.constant 0 : index
    %c0_3 = arith.constant 0 : index
    %4 = vector.load %arg3[%c0_2, %c0_3] : memref<24x1xi32, #tpu.memory_space<vmem>>, vector<24x1xi32>
    %5 = tpu.iota {dimensions = array<i32: 1>} : vector<1x160xi32>
    %c160_i32 = arith.constant 160 : i32
    %6 = arith.muli %arg1, %c160_i32 : i32
    %7 = vector.broadcast %6 : i32 to vector<1x160xi32>
    %8 = arith.addi %5, %7 : vector<1x160xi32>
    %c0_4 = arith.constant 0 : index
    %c0_5 = arith.constant 0 : index
    %9 = vector.load %arg5[%c0_4, %c0_5] : memref<24x1xf32, #tpu.memory_space<vmem>>, vector<24x1xf32>
    %cst = arith.constant dense<0xFF800000> : vector<24xf32>
    %10 = vector.multi_reduction <maximumf>, %3, %cst [1] : vector<24x160xf32> to vector<24xf32>
    %11 = vector.shape_cast %10 : vector<24xf32> to vector<24x1xf32>
    %12 = arith.maximumf %9, %11 : vector<24x1xf32>
    %13 = vector.broadcast %8 : vector<1x160xi32> to vector<24x160xi32>
    %14 = vector.broadcast %4 : vector<24x1xi32> to vector<24x160xi32>
    %15 = arith.cmpi eq, %13, %14 : vector<24x160xi32>
    %c0_6 = arith.constant 0 : index
    %c0_7 = arith.constant 0 : index
    %16 = vector.load %arg7[%c0_6, %c0_7] : memref<24x1xf32, #tpu.memory_space<vmem>>, vector<24x1xf32>
    %cst_8 = arith.constant 0.000000e+00 : f32
    %17 = vector.broadcast %cst_8 : f32 to vector<24x160xf32>
    %18 = arith.select %15, %3, %17 : vector<24x160xi1>, vector<24x160xf32>
    %cst_9 = arith.constant dense<0.000000e+00> : vector<24xf32>
    %19 = vector.multi_reduction <add>, %18, %cst_9 [1] : vector<24x160xf32> to vector<24xf32>
    %20 = vector.shape_cast %19 : vector<24xf32> to vector<24x1xf32>
    %21 = arith.addf %16, %20 : vector<24x1xf32>
    %c0_10 = arith.constant 0 : index
    %c0_11 = arith.constant 0 : index
    %22 = vector.load %arg7[%c0_10, %c0_11] : memref<24x1xf32, #tpu.memory_space<vmem>>, vector<24x1xf32>
    tpu.vector_store %arg7[%c0_10, %c0_11], %21 {strides = array<i32>} : memref<24x1xf32, #tpu.memory_space<vmem>>, vector<24x1xf32>,
    %23 = vector.broadcast %12 : vector<24x1xf32> to vector<24x160xf32>
    %24 = arith.subf %3, %23 : vector<24x160xf32>
    %25 = math.exp %24 : vector<24x160xf32>
    %c0_12 = arith.constant 0 : index
    %c0_13 = arith.constant 0 : index
    %26 = vector.load %arg6[%c0_12, %c0_13] : memref<24x1xf32, #tpu.memory_space<vmem>>, vector<24x1xf32>
    %27 = arith.subf %9, %12 : vector<24x1xf32>
    %28 = math.exp %27 : vector<24x1xf32>
    %29 = arith.mulf %26, %28 : vector<24x1xf32>
    %cst_14 = arith.constant dense<0.000000e+00> : vector<24xf32>
    %30 = vector.multi_reduction <add>, %25, %cst_14 [1] : vector<24x160xf32> to vector<24xf32>
    %31 = vector.shape_cast %30 : vector<24xf32> to vector<24x1xf32>
    %32 = arith.addf %29, %31 : vector<24x1xf32>
    %c0_15 = arith.constant 0 : index
    %c0_16 = arith.constant 0 : index
    %33 = vector.load %arg6[%c0_15, %c0_16] : memref<24x1xf32, #tpu.memory_space<vmem>>, vector<24x1xf32>
    tpu.vector_store %arg6[%c0_15, %c0_16], %32 {strides = array<i32>} : memref<24x1xf32, #tpu.memory_space<vmem>>, vector<24x1xf32>,
    %c0_17 = arith.constant 0 : index
    %c0_18 = arith.constant 0 : index
    %34 = vector.load %arg5[%c0_17, %c0_18] : memref<24x1xf32, #tpu.memory_space<vmem>>, vector<24x1xf32>
    tpu.vector_store %arg5[%c0_17, %c0_18], %12 {strides = array<i32>} : memref<24x1xf32, #tpu.memory_space<vmem>>, vector<24x1xf32>,
    %c0_i32_19 = arith.constant 0 : i32
    %35 = arith.cmpi eq, %arg1, %c0_i32_19 : i32
    %36 = arith.extui %35 : i1 to i32
    %c0_i32_20 = arith.constant 0 : i32
    %37 = arith.cmpi ne, %36, %c0_i32_20 : i32
    scf.if %37 {
      %c0_21 = arith.constant 0 : index
      %c0_22 = arith.constant 0 : index
      %38 = vector.load %arg5[%c0_21, %c0_22] : memref<24x1xf32, #tpu.memory_space<vmem>>, vector<24x1xf32>
      %c0_23 = arith.constant 0 : index
      %c0_24 = arith.constant 0 : index
      %39 = vector.load %arg6[%c0_23, %c0_24] : memref<24x1xf32, #tpu.memory_space<vmem>>, vector<24x1xf32>
      %40 = math.log %39 : vector<24x1xf32>
      %41 = arith.addf %38, %40 : vector<24x1xf32>
      %c0_25 = arith.constant 0 : index
      %c0_26 = arith.constant 0 : index
      %42 = vector.load %arg7[%c0_25, %c0_26] : memref<24x1xf32, #tpu.memory_space<vmem>>, vector<24x1xf32>
      %43 = arith.subf %41, %42 : vector<24x1xf32>
      %c0_27 = arith.constant 0 : index
      %c0_28 = arith.constant 0 : index
      %44 = vector.load %arg4[%c0_27, %c0_28] : memref<24x1xf32, #tpu.memory_space<vmem>>, vector<24x1xf32>
      tpu.vector_store %arg4[%c0_27, %c0_28], %43 {strides = array<i32>} : memref<24x1xf32, #tpu.memory_space<vmem>>, vector<24x1xf32>,
    } else {
    }
    return
  }
  func.func @transform_0(%arg0: i32, %arg1: i32) -> (i32, i32) {
    %c0_i32 = arith.constant 0 : i32
    return %arg0, %arg1 : i32, i32
  }
  func.func @transform_1(%arg0: i32, %arg1: i32) -> (i32, i32) {
    %c0_i32 = arith.constant 0 : i32
    %c0_i32_0 = arith.constant 0 : i32
    return %arg0, %c0_i32 : i32, i32
  }
  func.func @transform_2(%arg0: i32, %arg1: i32) -> (i32, i32) {
    %c0_i32 = arith.constant 0 : i32
    %c0_i32_0 = arith.constant 0 : i32
    return %arg0, %c0_i32 : i32, i32
  }
}

</mosaic_0001>

<llo_original>
// kernel: tpu_custom_call.1
$region0: #{tpu_custom_call.1}
  #allocation0 [shape = 'u32[]', space=smem, size = 0x4, offset = 0x4, fixed_abs, tag = 'smem constant byte address 0x4 - core index']
  #allocation1 [shape = 'u32[144,128]{1,0:T(1,128)}', space=vmem, size = 0x12000, scoped, tag = 'internal scratch']
  #allocation2 [shape = 'f32[24,1]{1,0:T(8,128)}', space=vmem, size = 0x3000, scoped, tag = 'scratch operand']
  #allocation3 [shape = 'f32[24,1]{1,0:T(8,128)}', space=vmem, size = 0x3000, scoped, tag = 'scratch operand']
  #allocation4 [shape = 'f32[24,1]{1,0:T(8,128)}', space=vmem, size = 0x3000, scoped, tag = 'scratch operand']
  %s0 = inlined_call_operand.hbm [shape: f32[24,160], index: 0, kind: input, shape index: {}]
  %s1 = inlined_call_operand.vmem [shape: s32[24,1], index: 1, kind: input, shape index: {}]
  %s2 = inlined_call_operand.vmem [shape: f32[24,1], index: 2, kind: output, shape index: {}]
  %s3 = sld [smem:[#allocation0]]
  $region30: #{tpu_custom_call.1} parent=0
    _
  %s5 = ssub.s32 1, %s3
  %s6 = scalar_select 0, %s5, %s3
  $region1: #{tpu_custom_call.1} parent=0
    #allocation5 [shape = 'u8[24576]{0}', space=vmem, size = 0x6000, scoped, tag = 'input window, operand 0, single buffered']
    #allocation6 [shape = 's32[1]{0}', space=sflag, size = 0x4, scoped, tag = 'scoped memory for tpu_custom_call.1']
    %7 = vsyncpa [#allocation6], 0
    // Predicated region
    $region2: #{tpu_custom_call.1} parent=1 // pred_check
      _
    $region3: #{tpu_custom_call.1} parent=1 // pred_check_branch
      %9 = sbr.rel (0) target = $region5
    $region4: #{tpu_custom_call.1} parent=1 // pred_region
      %s11 = ssub.s32 768, 768
      %12 = vsyncadd [#allocation6], %s11
      %s13 = sshll.u32 [#allocation5], 4
      %s14 = int_to_ptr.vmem [resolvable:$true] %s13
      %19 = dma.hbm_to_vmem [thread:$0]  %s0, 768, %s14, [#allocation6], 256, 256, 16
    $region5: #{tpu_custom_call.1} parent=1 // pred_fallthru
      _
    // Predicated region
    $region6: #{tpu_custom_call.1} parent=1 // pred_check
      _
    $region7: #{tpu_custom_call.1} parent=1 // pred_check_branch
      %21 = sbr.rel (0) target = $region9
    $region8: #{tpu_custom_call.1} parent=1 // pred_region
      _
    $region9: #{tpu_custom_call.1} parent=1 // pred_fallthru
      _
    // Predicated region
    $region10: #{tpu_custom_call.1} parent=1 // pred_check
      _
    $region11: #{tpu_custom_call.1} parent=1 // pred_check_branch
      %23 = sbr.rel (0) target = $region13
    $region12: #{tpu_custom_call.1} parent=1 // pred_region
      %24 = dma.done [#allocation6], 768
    $region13: #{tpu_custom_call.1} parent=1 // pred_fallthru
      _
    %p25 = scmp.eq.s32.totalorder 0, 0
    // Predicated region
    $region14: #{tpu_custom_call.1} parent=1 // pred_check
      %p26 = pneg %p25
    $region15: #{tpu_custom_call.1} parent=1 // pred_check_branch
      %28 = sbr.rel (%p26) target = $region17
    $region16: #{tpu_custom_call.1} parent=1 // pred_region
      %vm29 = vcmask 7168
      %30 = vst.msk [vmem:[#allocation2] sm:$0xff] %vm29, -inf
      %31 = vst.msk [vmem:[#allocation2 + $0x8] sm:$0xff] %vm29, -inf
      %32 = vst.msk [vmem:[#allocation2 + $0x10] sm:$0xff] %vm29, -inf
      %33 = vst.msk [vmem:[#allocation3] sm:$0xff] %vm29, 0.0
      %34 = vst.msk [vmem:[#allocation3 + $0x8] sm:$0xff] %vm29, 0.0
      %35 = vst.msk [vmem:[#allocation3 + $0x10] sm:$0xff] %vm29, 0.0
      %36 = vst.msk [vmem:[#allocation4] sm:$0xff] %vm29, 0.0
      %37 = vst.msk [vmem:[#allocation4 + $0x8] sm:$0xff] %vm29, 0.0
      %38 = vst.msk [vmem:[#allocation4 + $0x10] sm:$0xff] %vm29, 0.0
    $region17: #{tpu_custom_call.1} parent=1 // pred_fallthru
      _
    %v39 = vld [vmem:[#allocation5] sm:$0xff]
    %v40 = vld [vmem:[#allocation5 + $0x8] sm:$0xff]
    %v41 = vld [vmem:[#allocation5 + $0x10] sm:$0xff]
    %v42 = vld [vmem:[#allocation5 + $0x18] sm:$0xff]
    %v43 = vld [vmem:[#allocation5 + $0x20] sm:$0xff]
    %v44 = vld [vmem:[#allocation5 + $0x28] sm:$0xff]
    %v45 = vld [vmem:[%s1] sm:$0xff]
    %v46 = vld [vmem:[%s1 + $0x8] sm:$0xff]
    %v47 = vld [vmem:[%s1 + $0x10] sm:$0xff]
    %v48 = vlaneseq
    %v49 = vand.u32 %v48, 127
    %v50 = vadd.s32 %v49, 128
    %s51 = smul.u32 0, 160
    %v52 = vstv %s51
    %v53 = vadd.s32 %v49, %v52
    %v54 = vadd.s32 %v50, %v52
    %v55 = vld [vmem:[#allocation2] sm:$0xff]
    %v56 = vld [vmem:[#allocation2 + $0x8] sm:$0xff]
    %v57 = vld [vmem:[#allocation2 + $0x10] sm:$0xff]
    %vm58 = vcmask 261120
    %v59 = vsel %vm58, %v40, -inf
    %v60 = vmax.f32 %v39, %v59
    %61 = vmax.xlane.f32.xlu0 %v60
    %v62 = vpop.xlane.xlu0 %61
    %v63 = vsel %vm58, %v42, -inf
    %v64 = vmax.f32 %v41, %v63
    %65 = vmax.xlane.f32.xlu0 %v64
    %v66 = vpop.xlane.xlu0 %65
    %v67 = vsel %vm58, %v44, -inf
    %v68 = vmax.f32 %v43, %v67
    %69 = vmax.xlane.f32.xlu0 %v68
    %v70 = vpop.xlane.xlu0 %69
    %v71 = vmax.f32 %v55, %v62
    %v72 = vmax.f32 %v56, %v66
    %v73 = vmax.f32 %v57, %v70
    %74 = vset.pattern.permute.xlu0 0
    %75 = vperm.xlu0 %74, %v45
    %v76 = vpop.permute.xlu0 %75
    %77 = vset.pattern.permute.xlu0 0
    %78 = vperm.xlu0 %77, %v46
    %v79 = vpop.permute.xlu0 %78
    %80 = vset.pattern.permute.xlu0 0
    %81 = vperm.xlu0 %80, %v47
    %v82 = vpop.permute.xlu0 %81
    %vm83 = vcmp.eq.s32.totalorder %v53, %v76
    %vm84 = vcmp.eq.s32.totalorder %v54, %v76
    %vm85 = vcmp.eq.s32.totalorder %v53, %v79
    %vm86 = vcmp.eq.s32.totalorder %v54, %v79
    %vm87 = vcmp.eq.s32.totalorder %v53, %v82
    %vm88 = vcmp.eq.s32.totalorder %v54, %v82
    %v89 = vld [vmem:[#allocation4] sm:$0xff]
    %v90 = vld [vmem:[#allocation4 + $0x8] sm:$0xff]
    %v91 = vld [vmem:[#allocation4 + $0x10] sm:$0xff]
    %v92 = vsel %vm83, %v39, 0.0
    %v93 = vsel %vm84, %v40, 0.0
    %v94 = vsel %vm85, %v41, 0.0
    %v95 = vsel %vm86, %v42, 0.0
    %v96 = vsel %vm87, %v43, 0.0
    %v97 = vsel %vm88, %v44, 0.0
    %v98 = vsel %vm58, %v93, 0.0
    %v99 = vadd.f32 %v92, %v98
    %100 = vadd.xlane.f32.xlu0 %v99
    %v101 = vpop.xlane.xlu0 %100
    %v102 = vsel %vm58, %v95, 0.0
    %v103 = vadd.f32 %v94, %v102
    %104 = vadd.xlane.f32.xlu0 %v103
    %v105 = vpop.xlane.xlu0 %104
    %v106 = vsel %vm58, %v97, 0.0
    %v107 = vadd.f32 %v96, %v106
    %108 = vadd.xlane.f32.xlu0 %v107
    %v109 = vpop.xlane.xlu0 %108
    %v110 = vadd.f32 %v89, %v101
    %v111 = vadd.f32 %v90, %v105
    %v112 = vadd.f32 %v91, %v109
    %vm113 = vcmask 7168
    %114 = vst.msk [vmem:[#allocation4] sm:$0xff] %vm113, %v110
    %115 = vst.msk [vmem:[#allocation4 + $0x8] sm:$0xff] %vm113, %v111
    %116 = vst.msk [vmem:[#allocation4 + $0x10] sm:$0xff] %vm113, %v112
    %118 = vset.pattern.permute.xlu0 0
    %119 = vperm.xlu0 %118, %v71
    %v120 = vpop.permute.xlu0 %119
    %123 = vset.pattern.permute.xlu0 0
    %124 = vperm.xlu0 %123, %v72
    %v125 = vpop.permute.xlu0 %124
    %128 = vset.pattern.permute.xlu0 0
    %129 = vperm.xlu0 %128, %v73
    %v130 = vpop.permute.xlu0 %129
    %v132 = vsub.f32 %v39, %v120
    %v133 = vsub.f32 %v40, %v120
    %v134 = vsub.f32 %v41, %v125
    %v135 = vsub.f32 %v42, %v125
    %v136 = vsub.f32 %v43, %v130
    %v137 = vsub.f32 %v44, %v130
    %v138 = vmul.f32 %v132, 1.442695
    %v139 = vpow.pop %v138
    %v140 = vmul.f32 %v133, 1.442695
    %v141 = vpow.pop %v140
    %v142 = vmul.f32 %v134, 1.442695
    %v143 = vpow.pop %v142
    %v144 = vmul.f32 %v135, 1.442695
    %v145 = vpow.pop %v144
    %v146 = vmul.f32 %v136, 1.442695
    %v147 = vpow.pop %v146
    %v148 = vmul.f32 %v137, 1.442695
    %v149 = vpow.pop %v148
    %v150 = vld [vmem:[#allocation3] sm:$0xff]
    %v151 = vld [vmem:[#allocation3 + $0x8] sm:$0xff]
    %v152 = vld [vmem:[#allocation3 + $0x10] sm:$0xff]
    %v153 = vsub.f32 %v55, %v71
    %v154 = vsub.f32 %v56, %v72
    %v155 = vsub.f32 %v57, %v73
    %v156 = vmul.f32 %v153, 1.442695
    %v157 = vpow.pop %v156
    %v158 = vmul.f32 %v154, 1.442695
    %v159 = vpow.pop %v158
    %v160 = vmul.f32 %v155, 1.442695
    %v161 = vpow.pop %v160
    %v162 = vmul.f32 %v150, %v157
    %v163 = vmul.f32 %v151, %v159
    %v164 = vmul.f32 %v152, %v161
    %v165 = vsel %vm58, %v141, 0.0
    %v166 = vadd.f32 %v139, %v165
    %167 = vadd.xlane.f32.xlu0 %v166
    %v168 = vpop.xlane.xlu0 %167
    %v169 = vsel %vm58, %v145, 0.0
    %v170 = vadd.f32 %v143, %v169
    %171 = vadd.xlane.f32.xlu0 %v170
    %v172 = vpop.xlane.xlu0 %171
    %v173 = vsel %vm58, %v149, 0.0
    %v174 = vadd.f32 %v147, %v173
    %175 = vadd.xlane.f32.xlu0 %v174
    %v176 = vpop.xlane.xlu0 %175
    %v177 = vadd.f32 %v162, %v168
    %v178 = vadd.f32 %v163, %v172
    %v179 = vadd.f32 %v164, %v176
    %180 = vst.msk [vmem:[#allocation3] sm:$0xff] %vm113, %v177
    %181 = vst.msk [vmem:[#allocation3 + $0x8] sm:$0xff] %vm113, %v178
    %182 = vst.msk [vmem:[#allocation3 + $0x10] sm:$0xff] %vm113, %v179
    %183 = vst.msk [vmem:[#allocation2] sm:$0xff] %vm113, %v71
    %184 = vst.msk [vmem:[#allocation2 + $0x8] sm:$0xff] %vm113, %v72
    %185 = vst.msk [vmem:[#allocation2 + $0x10] sm:$0xff] %vm113, %v73
    // Predicated region
    $region18: #{tpu_custom_call.1} parent=1 // pred_check
      %p186 = pneg %p25
    $region19: #{tpu_custom_call.1} parent=1 // pred_check_branch
      %188 = sbr.rel (%p186) target = $region21
    $region20: #{tpu_custom_call.1} parent=1 // pred_region
      %v189 = vld [vmem:[#allocation2] sm:$0xff]
      %v190 = vld [vmem:[#allocation2 + $0x8] sm:$0xff]
      %v191 = vld [vmem:[#allocation2 + $0x10] sm:$0xff]
      %v192 = vld [vmem:[#allocation3] sm:$0xff]
      %v193 = vld [vmem:[#allocation3 + $0x8] sm:$0xff]
      %v194 = vld [vmem:[#allocation3 + $0x10] sm:$0xff]
      %v195 = vlog2.pop %v192
      %v196 = vmul.f32 %v195, 0.6931472
      %v197 = vlog2.pop %v193
      %v198 = vmul.f32 %v197, 0.6931472
      %v199 = vlog2.pop %v194
      %v200 = vmul.f32 %v199, 0.6931472
      %v201 = vadd.f32 %v189, %v196
      %v202 = vadd.f32 %v190, %v198
      %v203 = vadd.f32 %v191, %v200
      %v204 = vld [vmem:[#allocation4] sm:$0xff]
      %v205 = vld [vmem:[#allocation4 + $0x8] sm:$0xff]
      %v206 = vld [vmem:[#allocation4 + $0x10] sm:$0xff]
      %v207 = vsub.f32 %v201, %v204
      %v208 = vsub.f32 %v202, %v205
      %v209 = vsub.f32 %v203, %v206
      %210 = vst.msk [vmem:[%s2] sm:$0xff] %vm113, %v207
      %211 = vst.msk [vmem:[%s2 + $0x8] sm:$0xff] %vm113, %v208
      %212 = vst.msk [vmem:[%s2 + $0x10] sm:$0xff] %vm113, %v209
    $region21: #{tpu_custom_call.1} parent=1 // pred_fallthru
      _
    // Predicated region
    $region22: #{tpu_custom_call.1} parent=1 // pred_check
      _
    $region23: #{tpu_custom_call.1} parent=1 // pred_check_branch
      %214 = sbr.rel (0) target = $region25
    $region24: #{tpu_custom_call.1} parent=1 // pred_region
      _
    $region25: #{tpu_custom_call.1} parent=1 // pred_fallthru
      _
    // Predicated region
    $region26: #{tpu_custom_call.1} parent=1 // pred_check
      _
    $region27: #{tpu_custom_call.1} parent=1 // pred_check_branch
      %216 = sbr.rel (0) target = $region29
    $region28: #{tpu_custom_call.1} parent=1 // pred_region
      _
    $region29: #{tpu_custom_call.1} parent=1 // pred_fallthru
      _
    %217 = vsyncpa [#allocation6], 1

</llo_original>
